<compile_context>
chip_gen: v5e
topology: v5e:2x2
jax: 0.10.0
libtpu: 0.0.40
codegen_flags: <defaults>
</compile_context>

<pallas_src>
import jax
import jax.numpy as jnp
from jax import lax
from jax.experimental import pallas as pl
from jax.experimental.pallas import tpu as pltpu


def _round_up(x, m):
    return ((x + m - 1) // m) * m


def rnn_kernel(pre0_ref, h0_ref, h1_ref, w_hh0_ref, w_l1_ref, b_l1_ref,
               out_ref, hn_ref):
    # All operands are fully VMEM-resident; the sequential recurrence runs as
    # a single unrolled in-kernel loop.
    S = pre0_ref.shape[0]
    w_hh0 = w_hh0_ref[...]            # (Hp, Hp)
    w_l1 = w_l1_ref[...]              # (2*Hp, Hp)  fused [W_ih1^T ; W_hh1^T]
    b_l1 = b_l1_ref[...]              # (1, Hp)     b_ih1 + b_hh1

    def step(t, carry):
        h0, h1 = carry                # (Bp, Hp) each, f32
        # Layer 0: x-projection (incl. both biases) was precomputed; only the
        # recurrent matmul remains on the critical path.
        z0 = pre0_ref[t] + jnp.dot(h0, w_hh0,
                                   preferred_element_type=jnp.float32)
        h0n = jnp.tanh(z0)
        # Layer 1: fused ih/hh matmul on concatenated [h0_new, h1].
        cat = jnp.concatenate([h0n, h1], axis=-1)          # (Bp, 2*Hp)
        z1 = jnp.dot(cat, w_l1, preferred_element_type=jnp.float32) + b_l1
        h1n = jnp.tanh(z1)
        out_ref[t] = h1n.astype(out_ref.dtype)             # lane-dense store
        return (h0n, h1n)

    h0f, h1f = lax.fori_loop(0, S, step, (h0_ref[...], h1_ref[...]),
                             unroll=True)
    # Final states written exactly once.
    hn_ref[0] = h0f.astype(hn_ref.dtype)
    hn_ref[1] = h1f.astype(hn_ref.dtype)


def rnn_forward(x, h_0, params):
    S, B, D = x.shape
    H = h_0.shape[-1]
    f32 = jnp.float32

    # Pad batch to sublane multiple (8) and hidden to lane multiple (128).
    Bp = _round_up(max(B, 8), 8)
    Hp = _round_up(max(H, 128), 128)

    # --- Hoisted layer-0 input projection (no sequential dependence) -------
    pre0 = (x.reshape(S * B, D).astype(f32)
            @ params["weight_ih_l0"].T.astype(f32)
            + params["bias_ih_l0"].astype(f32)
            + params["bias_hh_l0"].astype(f32)).reshape(S, B, H)
    pre0_p = jnp.zeros((S, Bp, Hp), f32).at[:, :B, :H].set(pre0)

    # --- Initial hidden states ---------------------------------------------
    h0_p = jnp.zeros((Bp, Hp), f32).at[:B, :H].set(h_0[0].astype(f32))
    h1_p = jnp.zeros((Bp, Hp), f32).at[:B, :H].set(h_0[1].astype(f32))

    # --- Weights (pre-transposed: nn.Linear does x @ W^T + b) --------------
    w_hh0 = jnp.zeros((Hp, Hp), f32).at[:H, :H].set(
        params["weight_hh_l0"].T.astype(f32))
    # Fused layer-1 weight: contraction axis stacks [ih ; hh].
    w_l1 = jnp.zeros((2 * Hp, Hp), f32)
    w_l1 = w_l1.at[:H, :H].set(params["weight_ih_l1"].T.astype(f32))
    w_l1 = w_l1.at[Hp:Hp + H, :H].set(params["weight_hh_l1"].T.astype(f32))
    b_l1 = jnp.zeros((1, Hp), f32).at[0, :H].set(
        params["bias_ih_l1"].astype(f32) + params["bias_hh_l1"].astype(f32))

    vmem = pl.BlockSpec(memory_space=pltpu.MemorySpace.VMEM)
    out_p, hn_p = pl.pallas_call(
        rnn_kernel,
        out_shape=(
            jax.ShapeDtypeStruct((S, Bp, Hp), f32),
            jax.ShapeDtypeStruct((2, Bp, Hp), f32),
        ),
        in_specs=[vmem] * 6,
        out_specs=(vmem, vmem),
        # TODO(synk): for very long sequences, chunk S with an outer
        # "arbitrary" grid axis instead of holding the whole slab in VMEM.
    )(pre0_p, h0_p, h1_p, w_hh0, w_l1, b_l1)

    outputs = out_p[:, :B, :H].astype(x.dtype)
    h_n = hn_p[:, :B, :H].astype(x.dtype)
    return outputs, h_n


def rnn_reference(x, h_0, params):
    # Pure-JAX reference mirroring the PyTorch forward exactly.
    h0, h1 = h_0[0], h_0[1]
    outs = []
    for t in range(x.shape[0]):
        xt = x[t]
        h0 = jnp.tanh(xt @ params["weight_ih_l0"].T + params["bias_ih_l0"]
                      + h0 @ params["weight_hh_l0"].T + params["bias_hh_l0"])
        h1 = jnp.tanh(h0 @ params["weight_ih_l1"].T + params["bias_ih_l1"]
                      + h1 @ params["weight_hh_l1"].T + params["bias_hh_l1"])
        outs.append(h1)
    return jnp.stack(outs), jnp.stack([h0, h1])


if __name__ == "__main__":
    S, B, D, H = 8, 4, 16, 32
    key = jax.random.PRNGKey(0)
    ks = jax.random.split(key, 11)

    params = {
        "weight_ih_l0": 0.1 * jax.random.normal(ks[0], (H, D), jnp.float32),
        "bias_ih_l0":   0.1 * jax.random.normal(ks[1], (H,), jnp.float32),
        "weight_hh_l0": 0.1 * jax.random.normal(ks[2], (H, H), jnp.float32),
        "bias_hh_l0":   0.1 * jax.random.normal(ks[3], (H,), jnp.float32),
        "weight_ih_l1": 0.1 * jax.random.normal(ks[4], (H, H), jnp.float32),
        "bias_ih_l1":   0.1 * jax.random.normal(ks[5], (H,), jnp.float32),
        "weight_hh_l1": 0.1 * jax.random.normal(ks[6], (H, H), jnp.float32),
        "bias_hh_l1":   0.1 * jax.random.normal(ks[7], (H,), jnp.float32),
    }
    x = jax.random.normal(ks[8], (S, B, D), jnp.float32)
    h_0 = jax.random.normal(ks[9], (2, B, H), jnp.float32)

    outputs, h_n = rnn_forward(x, h_0, params)
    outputs = jax.block_until_ready(outputs)
    h_n = jax.block_until_ready(h_n)

    ref_out, ref_hn = rnn_reference(x, h_0, params)
    assert jnp.allclose(outputs, ref_out, atol=1e-5, rtol=1e-5)
    assert jnp.allclose(h_n, ref_hn, atol=1e-5, rtol=1e-5)
    print("KERNEL_OK")
</pallas_src>

<mosaic_0001>
module attributes {stable_mosaic.version = 11 : i64} {
  func.func @rnn_kernel(%arg0: memref<8x8x128xf32, #tpu.memory_space<vmem>>, %arg1: memref<8x128xf32, #tpu.memory_space<vmem>>, %arg2: memref<8x128xf32, #tpu.memory_space<vmem>>, %arg3: memref<128x128xf32, #tpu.memory_space<vmem>>, %arg4: memref<256x128xf32, #tpu.memory_space<vmem>>, %arg5: memref<1x128xf32, #tpu.memory_space<vmem>>, %arg6: memref<8x8x128xf32, #tpu.memory_space<vmem>>, %arg7: memref<2x8x128xf32, #tpu.memory_space<vmem>>) attributes {dimension_semantics = [], scalar_prefetch = 0 : i64, scratch_operands = 0 : i64, tpu.core_type = #tpu.core_type<tc>} {
    %c0 = arith.constant 0 : index
    %c0_0 = arith.constant 0 : index
    %0 = vector.load %arg3[%c0, %c0_0] : memref<128x128xf32, #tpu.memory_space<vmem>>, vector<128x128xf32>
    %c0_1 = arith.constant 0 : index
    %c0_2 = arith.constant 0 : index
    %1 = vector.load %arg4[%c0_1, %c0_2] : memref<256x128xf32, #tpu.memory_space<vmem>>, vector<256x128xf32>
    %c0_3 = arith.constant 0 : index
    %c0_4 = arith.constant 0 : index
    %2 = vector.load %arg5[%c0_3, %c0_4] : memref<1x128xf32, #tpu.memory_space<vmem>>, vector<1x128xf32>
    %c0_5 = arith.constant 0 : index
    %c0_6 = arith.constant 0 : index
    %3 = vector.load %arg1[%c0_5, %c0_6] : memref<8x128xf32, #tpu.memory_space<vmem>>, vector<8x128xf32>
    %c0_7 = arith.constant 0 : index
    %c0_8 = arith.constant 0 : index
    %4 = vector.load %arg2[%c0_7, %c0_8] : memref<8x128xf32, #tpu.memory_space<vmem>>, vector<8x128xf32>
    %c0_i32 = arith.constant 0 : i32
    %5 = arith.index_cast %c0_i32 : i32 to index
    %c0_9 = arith.constant 0 : index
    %c0_10 = arith.constant 0 : index
    %6 = vector.load %arg0[%5, %c0_9, %c0_10] : memref<8x8x128xf32, #tpu.memory_space<vmem>>, vector<1x8x128xf32>
    %7 = vector.shape_cast %6 : vector<1x8x128xf32> to vector<8x128xf32>
    %cst = arith.constant dense<0.000000e+00> : vector<8x128xf32>
    %8 = tpu.matmul %3, %0, %cst {dimension_numbers = #tpu.dot_dimension_numbers<[1], [0], [0], [1], [0, 0, 1, 1], [], []>} : vector<8x128xf32>, vector<128x128xf32>, vector<8x128xf32> -> vector<8x128xf32>
    %9 = arith.addf %7, %8 : vector<8x128xf32>
    %10 = math.tanh %9 : vector<8x128xf32>
    %11 = tpu.concatenate %10, %4 in 1 : vector<8x128xf32>, vector<8x128xf32> -> vector<8x256xf32>
    %cst_11 = arith.constant dense<0.000000e+00> : vector<8x128xf32>
    %12 = tpu.matmul %11, %1, %cst_11 {dimension_numbers = #tpu.dot_dimension_numbers<[1], [0], [0], [1], [0, 0, 1, 1], [], []>} : vector<8x256xf32>, vector<256x128xf32>, vector<8x128xf32> -> vector<8x128xf32>
    %13 = vector.broadcast %2 : vector<1x128xf32> to vector<8x128xf32>
    %14 = arith.addf %12, %13 : vector<8x128xf32>
    %15 = math.tanh %14 : vector<8x128xf32>
    %16 = arith.index_cast %c0_i32 : i32 to index
    %c0_12 = arith.constant 0 : index
    %c0_13 = arith.constant 0 : index
    %17 = vector.load %arg6[%16, %c0_12, %c0_13] : memref<8x8x128xf32, #tpu.memory_space<vmem>>, vector<1x8x128xf32>
    %18 = vector.shape_cast %17 : vector<1x8x128xf32> to vector<8x128xf32>
    %19 = vector.shape_cast %15 : vector<8x128xf32> to vector<1x8x128xf32>
    tpu.vector_store %arg6[%16, %c0_12, %c0_13], %19 {strides = array<i32>} : memref<8x8x128xf32, #tpu.memory_space<vmem>>, vector<1x8x128xf32>,
    %c1_i32 = arith.constant 1 : i32
    %20 = arith.index_cast %c1_i32 : i32 to index
    %c0_14 = arith.constant 0 : index
    %c0_15 = arith.constant 0 : index
    %21 = vector.load %arg0[%20, %c0_14, %c0_15] : memref<8x8x128xf32, #tpu.memory_space<vmem>>, vector<1x8x128xf32>
    %22 = vector.shape_cast %21 : vector<1x8x128xf32> to vector<8x128xf32>
    %cst_16 = arith.constant dense<0.000000e+00> : vector<8x128xf32>
    %23 = tpu.matmul %10, %0, %cst_16 {dimension_numbers = #tpu.dot_dimension_numbers<[1], [0], [0], [1], [0, 0, 1, 1], [], []>} : vector<8x128xf32>, vector<128x128xf32>, vector<8x128xf32> -> vector<8x128xf32>
    %24 = arith.addf %22, %23 : vector<8x128xf32>
    %25 = math.tanh %24 : vector<8x128xf32>
    %26 = tpu.concatenate %25, %15 in 1 : vector<8x128xf32>, vector<8x128xf32> -> vector<8x256xf32>
    %cst_17 = arith.constant dense<0.000000e+00> : vector<8x128xf32>
    %27 = tpu.matmul %26, %1, %cst_17 {dimension_numbers = #tpu.dot_dimension_numbers<[1], [0], [0], [1], [0, 0, 1, 1], [], []>} : vector<8x256xf32>, vector<256x128xf32>, vector<8x128xf32> -> vector<8x128xf32>
    %28 = vector.broadcast %2 : vector<1x128xf32> to vector<8x128xf32>
    %29 = arith.addf %27, %28 : vector<8x128xf32>
    %30 = math.tanh %29 : vector<8x128xf32>
    %31 = arith.index_cast %c1_i32 : i32 to index
    %c0_18 = arith.constant 0 : index
    %c0_19 = arith.constant 0 : index
    %32 = vector.load %arg6[%31, %c0_18, %c0_19] : memref<8x8x128xf32, #tpu.memory_space<vmem>>, vector<1x8x128xf32>
    %33 = vector.shape_cast %32 : vector<1x8x128xf32> to vector<8x128xf32>
    %34 = vector.shape_cast %30 : vector<8x128xf32> to vector<1x8x128xf32>
    tpu.vector_store %arg6[%31, %c0_18, %c0_19], %34 {strides = array<i32>} : memref<8x8x128xf32, #tpu.memory_space<vmem>>, vector<1x8x128xf32>,
    %c2_i32 = arith.constant 2 : i32
    %35 = arith.index_cast %c2_i32 : i32 to index
    %c0_20 = arith.constant 0 : index
    %c0_21 = arith.constant 0 : index
    %36 = vector.load %arg0[%35, %c0_20, %c0_21] : memref<8x8x128xf32, #tpu.memory_space<vmem>>, vector<1x8x128xf32>
    %37 = vector.shape_cast %36 : vector<1x8x128xf32> to vector<8x128xf32>
    %cst_22 = arith.constant dense<0.000000e+00> : vector<8x128xf32>
    %38 = tpu.matmul %25, %0, %cst_22 {dimension_numbers = #tpu.dot_dimension_numbers<[1], [0], [0], [1], [0, 0, 1, 1], [], []>} : vector<8x128xf32>, vector<128x128xf32>, vector<8x128xf32> -> vector<8x128xf32>
    %39 = arith.addf %37, %38 : vector<8x128xf32>
    %40 = math.tanh %39 : vector<8x128xf32>
    %41 = tpu.concatenate %40, %30 in 1 : vector<8x128xf32>, vector<8x128xf32> -> vector<8x256xf32>
    %cst_23 = arith.constant dense<0.000000e+00> : vector<8x128xf32>
    %42 = tpu.matmul %41, %1, %cst_23 {dimension_numbers = #tpu.dot_dimension_numbers<[1], [0], [0], [1], [0, 0, 1, 1], [], []>} : vector<8x256xf32>, vector<256x128xf32>, vector<8x128xf32> -> vector<8x128xf32>
    %43 = vector.broadcast %2 : vector<1x128xf32> to vector<8x128xf32>
    %44 = arith.addf %42, %43 : vector<8x128xf32>
    %45 = math.tanh %44 : vector<8x128xf32>
    %46 = arith.index_cast %c2_i32 : i32 to index
    %c0_24 = arith.constant 0 : index
    %c0_25 = arith.constant 0 : index
    %47 = vector.load %arg6[%46, %c0_24, %c0_25] : memref<8x8x128xf32, #tpu.memory_space<vmem>>, vector<1x8x128xf32>
    %48 = vector.shape_cast %47 : vector<1x8x128xf32> to vector<8x128xf32>
    %49 = vector.shape_cast %45 : vector<8x128xf32> to vector<1x8x128xf32>
    tpu.vector_store %arg6[%46, %c0_24, %c0_25], %49 {strides = array<i32>} : memref<8x8x128xf32, #tpu.memory_space<vmem>>, vector<1x8x128xf32>,
    %c3_i32 = arith.constant 3 : i32
    %50 = arith.index_cast %c3_i32 : i32 to index
    %c0_26 = arith.constant 0 : index
    %c0_27 = arith.constant 0 : index
    %51 = vector.load %arg0[%50, %c0_26, %c0_27] : memref<8x8x128xf32, #tpu.memory_space<vmem>>, vector<1x8x128xf32>
    %52 = vector.shape_cast %51 : vector<1x8x128xf32> to vector<8x128xf32>
    %cst_28 = arith.constant dense<0.000000e+00> : vector<8x128xf32>
    %53 = tpu.matmul %40, %0, %cst_28 {dimension_numbers = #tpu.dot_dimension_numbers<[1], [0], [0], [1], [0, 0, 1, 1], [], []>} : vector<8x128xf32>, vector<128x128xf32>, vector<8x128xf32> -> vector<8x128xf32>
    %54 = arith.addf %52, %53 : vector<8x128xf32>
    %55 = math.tanh %54 : vector<8x128xf32>
    %56 = tpu.concatenate %55, %45 in 1 : vector<8x128xf32>, vector<8x128xf32> -> vector<8x256xf32>
    %cst_29 = arith.constant dense<0.000000e+00> : vector<8x128xf32>
    %57 = tpu.matmul %56, %1, %cst_29 {dimension_numbers = #tpu.dot_dimension_numbers<[1], [0], [0], [1], [0, 0, 1, 1], [], []>} : vector<8x256xf32>, vector<256x128xf32>, vector<8x128xf32> -> vector<8x128xf32>
    %58 = vector.broadcast %2 : vector<1x128xf32> to vector<8x128xf32>
    %59 = arith.addf %57, %58 : vector<8x128xf32>
    %60 = math.tanh %59 : vector<8x128xf32>
    %61 = arith.index_cast %c3_i32 : i32 to index
    %c0_30 = arith.constant 0 : index
    %c0_31 = arith.constant 0 : index
    %62 = vector.load %arg6[%61, %c0_30, %c0_31] : memref<8x8x128xf32, #tpu.memory_space<vmem>>, vector<1x8x128xf32>
    %63 = vector.shape_cast %62 : vector<1x8x128xf32> to vector<8x128xf32>
    %64 = vector.shape_cast %60 : vector<8x128xf32> to vector<1x8x128xf32>
    tpu.vector_store %arg6[%61, %c0_30, %c0_31], %64 {strides = array<i32>} : memref<8x8x128xf32, #tpu.memory_space<vmem>>, vector<1x8x128xf32>,
    %c4_i32 = arith.constant 4 : i32
    %65 = arith.index_cast %c4_i32 : i32 to index
    %c0_32 = arith.constant 0 : index
    %c0_33 = arith.constant 0 : index
    %66 = vector.load %arg0[%65, %c0_32, %c0_33] : memref<8x8x128xf32, #tpu.memory_space<vmem>>, vector<1x8x128xf32>
    %67 = vector.shape_cast %66 : vector<1x8x128xf32> to vector<8x128xf32>
    %cst_34 = arith.constant dense<0.000000e+00> : vector<8x128xf32>
    %68 = tpu.matmul %55, %0, %cst_34 {dimension_numbers = #tpu.dot_dimension_numbers<[1], [0], [0], [1], [0, 0, 1, 1], [], []>} : vector<8x128xf32>, vector<128x128xf32>, vector<8x128xf32> -> vector<8x128xf32>
    %69 = arith.addf %67, %68 : vector<8x128xf32>
    %70 = math.tanh %69 : vector<8x128xf32>
    %71 = tpu.concatenate %70, %60 in 1 : vector<8x128xf32>, vector<8x128xf32> -> vector<8x256xf32>
    %cst_35 = arith.constant dense<0.000000e+00> : vector<8x128xf32>
    %72 = tpu.matmul %71, %1, %cst_35 {dimension_numbers = #tpu.dot_dimension_numbers<[1], [0], [0], [1], [0, 0, 1, 1], [], []>} : vector<8x256xf32>, vector<256x128xf32>, vector<8x128xf32> -> vector<8x128xf32>
    %73 = vector.broadcast %2 : vector<1x128xf32> to vector<8x128xf32>
    %74 = arith.addf %72, %73 : vector<8x128xf32>
    %75 = math.tanh %74 : vector<8x128xf32>
    %76 = arith.index_cast %c4_i32 : i32 to index
    %c0_36 = arith.constant 0 : index
    %c0_37 = arith.constant 0 : index
    %77 = vector.load %arg6[%76, %c0_36, %c0_37] : memref<8x8x128xf32, #tpu.memory_space<vmem>>, vector<1x8x128xf32>
    %78 = vector.shape_cast %77 : vector<1x8x128xf32> to vector<8x128xf32>
    %79 = vector.shape_cast %75 : vector<8x128xf32> to vector<1x8x128xf32>
    tpu.vector_store %arg6[%76, %c0_36, %c0_37], %79 {strides = array<i32>} : memref<8x8x128xf32, #tpu.memory_space<vmem>>, vector<1x8x128xf32>,
    %c5_i32 = arith.constant 5 : i32
    %80 = arith.index_cast %c5_i32 : i32 to index
    %c0_38 = arith.constant 0 : index
    %c0_39 = arith.constant 0 : index
    %81 = vector.load %arg0[%80, %c0_38, %c0_39] : memref<8x8x128xf32, #tpu.memory_space<vmem>>, vector<1x8x128xf32>
    %82 = vector.shape_cast %81 : vector<1x8x128xf32> to vector<8x128xf32>
    %cst_40 = arith.constant dense<0.000000e+00> : vector<8x128xf32>
    %83 = tpu.matmul %70, %0, %cst_40 {dimension_numbers = #tpu.dot_dimension_numbers<[1], [0], [0], [1], [0, 0, 1, 1], [], []>} : vector<8x128xf32>, vector<128x128xf32>, vector<8x128xf32> -> vector<8x128xf32>
    %84 = arith.addf %82, %83 : vector<8x128xf32>
    %85 = math.tanh %84 : vector<8x128xf32>
    %86 = tpu.concatenate %85, %75 in 1 : vector<8x128xf32>, vector<8x128xf32> -> vector<8x256xf32>
    %cst_41 = arith.constant dense<0.000000e+00> : vector<8x128xf32>
    %87 = tpu.matmul %86, %1, %cst_41 {dimension_numbers = #tpu.dot_dimension_numbers<[1], [0], [0], [1], [0, 0, 1, 1], [], []>} : vector<8x256xf32>, vector<256x128xf32>, vector<8x128xf32> -> vector<8x128xf32>
    %88 = vector.broadcast %2 : vector<1x128xf32> to vector<8x128xf32>
    %89 = arith.addf %87, %88 : vector<8x128xf32>
    %90 = math.tanh %89 : vector<8x128xf32>
    %91 = arith.index_cast %c5_i32 : i32 to index
    %c0_42 = arith.constant 0 : index
    %c0_43 = arith.constant 0 : index
    %92 = vector.load %arg6[%91, %c0_42, %c0_43] : memref<8x8x128xf32, #tpu.memory_space<vmem>>, vector<1x8x128xf32>
    %93 = vector.shape_cast %92 : vector<1x8x128xf32> to vector<8x128xf32>
    %94 = vector.shape_cast %90 : vector<8x128xf32> to vector<1x8x128xf32>
    tpu.vector_store %arg6[%91, %c0_42, %c0_43], %94 {strides = array<i32>} : memref<8x8x128xf32, #tpu.memory_space<vmem>>, vector<1x8x128xf32>,
    %c6_i32 = arith.constant 6 : i32
    %95 = arith.index_cast %c6_i32 : i32 to index
    %c0_44 = arith.constant 0 : index
    %c0_45 = arith.constant 0 : index
    %96 = vector.load %arg0[%95, %c0_44, %c0_45] : memref<8x8x128xf32, #tpu.memory_space<vmem>>, vector<1x8x128xf32>
    %97 = vector.shape_cast %96 : vector<1x8x128xf32> to vector<8x128xf32>
    %cst_46 = arith.constant dense<0.000000e+00> : vector<8x128xf32>
    %98 = tpu.matmul %85, %0, %cst_46 {dimension_numbers = #tpu.dot_dimension_numbers<[1], [0], [0], [1], [0, 0, 1, 1], [], []>} : vector<8x128xf32>, vector<128x128xf32>, vector<8x128xf32> -> vector<8x128xf32>
    %99 = arith.addf %97, %98 : vector<8x128xf32>
    %100 = math.tanh %99 : vector<8x128xf32>
    %101 = tpu.concatenate %100, %90 in 1 : vector<8x128xf32>, vector<8x128xf32> -> vector<8x256xf32>
    %cst_47 = arith.constant dense<0.000000e+00> : vector<8x128xf32>
    %102 = tpu.matmul %101, %1, %cst_47 {dimension_numbers = #tpu.dot_dimension_numbers<[1], [0], [0], [1], [0, 0, 1, 1], [], []>} : vector<8x256xf32>, vector<256x128xf32>, vector<8x128xf32> -> vector<8x128xf32>
    %103 = vector.broadcast %2 : vector<1x128xf32> to vector<8x128xf32>
    %104 = arith.addf %102, %103 : vector<8x128xf32>
    %105 = math.tanh %104 : vector<8x128xf32>
    %106 = arith.index_cast %c6_i32 : i32 to index
    %c0_48 = arith.constant 0 : index
    %c0_49 = arith.constant 0 : index
    %107 = vector.load %arg6[%106, %c0_48, %c0_49] : memref<8x8x128xf32, #tpu.memory_space<vmem>>, vector<1x8x128xf32>
    %108 = vector.shape_cast %107 : vector<1x8x128xf32> to vector<8x128xf32>
    %109 = vector.shape_cast %105 : vector<8x128xf32> to vector<1x8x128xf32>
    tpu.vector_store %arg6[%106, %c0_48, %c0_49], %109 {strides = array<i32>} : memref<8x8x128xf32, #tpu.memory_space<vmem>>, vector<1x8x128xf32>,
    %c7_i32 = arith.constant 7 : i32
    %110 = arith.index_cast %c7_i32 : i32 to index
    %c0_50 = arith.constant 0 : index
    %c0_51 = arith.constant 0 : index
    %111 = vector.load %arg0[%110, %c0_50, %c0_51] : memref<8x8x128xf32, #tpu.memory_space<vmem>>, vector<1x8x128xf32>
    %112 = vector.shape_cast %111 : vector<1x8x128xf32> to vector<8x128xf32>
    %cst_52 = arith.constant dense<0.000000e+00> : vector<8x128xf32>
    %113 = tpu.matmul %100, %0, %cst_52 {dimension_numbers = #tpu.dot_dimension_numbers<[1], [0], [0], [1], [0, 0, 1, 1], [], []>} : vector<8x128xf32>, vector<128x128xf32>, vector<8x128xf32> -> vector<8x128xf32>
    %114 = arith.addf %112, %113 : vector<8x128xf32>
    %115 = math.tanh %114 : vector<8x128xf32>
    %116 = tpu.concatenate %115, %105 in 1 : vector<8x128xf32>, vector<8x128xf32> -> vector<8x256xf32>
    %cst_53 = arith.constant dense<0.000000e+00> : vector<8x128xf32>
    %117 = tpu.matmul %116, %1, %cst_53 {dimension_numbers = #tpu.dot_dimension_numbers<[1], [0], [0], [1], [0, 0, 1, 1], [], []>} : vector<8x256xf32>, vector<256x128xf32>, vector<8x128xf32> -> vector<8x128xf32>
    %118 = vector.broadcast %2 : vector<1x128xf32> to vector<8x128xf32>
    %119 = arith.addf %117, %118 : vector<8x128xf32>
    %120 = math.tanh %119 : vector<8x128xf32>
    %121 = arith.index_cast %c7_i32 : i32 to index
    %c0_54 = arith.constant 0 : index
    %c0_55 = arith.constant 0 : index
    %122 = vector.load %arg6[%121, %c0_54, %c0_55] : memref<8x8x128xf32, #tpu.memory_space<vmem>>, vector<1x8x128xf32>
    %123 = vector.shape_cast %122 : vector<1x8x128xf32> to vector<8x128xf32>
    %124 = vector.shape_cast %120 : vector<8x128xf32> to vector<1x8x128xf32>
    tpu.vector_store %arg6[%121, %c0_54, %c0_55], %124 {strides = array<i32>} : memref<8x8x128xf32, #tpu.memory_space<vmem>>, vector<1x8x128xf32>,
    %c8_i32 = arith.constant 8 : i32
    %c0_56 = arith.constant 0 : index
    %c0_57 = arith.constant 0 : index
    %c0_58 = arith.constant 0 : index
    %125 = vector.load %arg7[%c0_56, %c0_57, %c0_58] : memref<2x8x128xf32, #tpu.memory_space<vmem>>, vector<1x8x128xf32>
    %126 = vector.shape_cast %125 : vector<1x8x128xf32> to vector<8x128xf32>
    %127 = vector.shape_cast %115 : vector<8x128xf32> to vector<1x8x128xf32>
    tpu.vector_store %arg7[%c0_56, %c0_57, %c0_58], %127 {strides = array<i32>} : memref<2x8x128xf32, #tpu.memory_space<vmem>>, vector<1x8x128xf32>,
    %c1 = arith.constant 1 : index
    %c0_59 = arith.constant 0 : index
    %c0_60 = arith.constant 0 : index
    %128 = vector.load %arg7[%c1, %c0_59, %c0_60] : memref<2x8x128xf32, #tpu.memory_space<vmem>>, vector<1x8x128xf32>
    %129 = vector.shape_cast %128 : vector<1x8x128xf32> to vector<8x128xf32>
    %130 = vector.shape_cast %120 : vector<8x128xf32> to vector<1x8x128xf32>
    tpu.vector_store %arg7[%c1, %c0_59, %c0_60], %130 {strides = array<i32>} : memref<2x8x128xf32, #tpu.memory_space<vmem>>, vector<1x8x128xf32>,
    return
  }
}

</mosaic_0001>

<llo_original>
// kernel: tpu_custom_call.1
$region0: #{tpu_custom_call.1}
  #allocation0 [shape = 'u32[]', space=smem, size = 0x4, offset = 0x4, fixed_abs, tag = 'smem constant byte address 0x4 - core index']
  #allocation1 [shape = 'u32[72,128]{1,0:T(1,128)}', space=vmem, size = 0x9000, scoped, tag = 'internal scratch']
  %s0 = inlined_call_operand.hbm [shape: f32[8,8,128], index: 0, kind: input, shape index: {}]
  %s1 = inlined_call_operand.hbm [shape: f32[8,128], index: 1, kind: input, shape index: {}]
  %s2 = inlined_call_operand.hbm [shape: f32[8,128], index: 2, kind: input, shape index: {}]
  %s3 = inlined_call_operand.hbm [shape: f32[128,128], index: 3, kind: input, shape index: {}]
  %s4 = inlined_call_operand.hbm [shape: f32[256,128], index: 4, kind: input, shape index: {}]
  %s5 = inlined_call_operand.vmem [shape: f32[1,128], index: 5, kind: input, shape index: {}]
  %s6 = inlined_call_operand.hbm [shape: f32[8,8,128], index: 6, kind: output, shape index: {0}]
  %s7 = inlined_call_operand.hbm [shape: f32[2,8,128], index: 7, kind: output, shape index: {1}]
  %8 = xla_tuple %s6, %s7
  %s9 = sld [smem:[#allocation0]]
  $region62: #{tpu_custom_call.1} parent=0
    _
  %s11 = ssub.s32 1, %s9
  %s12 = scalar_select 0, %s11, %s9
  $region1: #{tpu_custom_call.1} parent=0
    #allocation2 [shape = 'u8[32768]{0}', space=vmem, size = 0x8000, scoped, tag = 'input window, operand 0, single buffered']
    #allocation3 [shape = 's32[1]{0}', space=sflag, size = 0x4, scoped, tag = 'scoped memory for tpu_custom_call.1']
    #allocation4 [shape = 's32[1]{0}', space=sflag, size = 0x4, scoped, tag = 'scoped memory for tpu_custom_call.1']
    #allocation5 [shape = 'u8[4096]{0}', space=vmem, size = 0x1000, scoped, tag = 'input window, operand 1, single buffered']
    #allocation6 [shape = 's32[1]{0}', space=sflag, size = 0x4, scoped, tag = 'scoped memory for tpu_custom_call.1']
    #allocation7 [shape = 'u8[4096]{0}', space=vmem, size = 0x1000, scoped, tag = 'input window, operand 2, single buffered']
    #allocation8 [shape = 'u8[65536]{0}', space=vmem, size = 0x10000, scoped, tag = 'input window, operand 3, single buffered']
    #allocation9 [shape = 's32[1]{0}', space=sflag, size = 0x4, scoped, tag = 'scoped memory for tpu_custom_call.1']
    #allocation10 [shape = 'u8[131072]{0}', space=vmem, size = 0x20000, scoped, tag = 'input window, operand 4, single buffered']
    #allocation11 [shape = 'u8[32768]{0}', space=vmem, size = 0x8000, scoped, tag = 'output window, operand 0, single buffered']
    #allocation12 [shape = 'u8[8192]{0}', space=vmem, size = 0x2000, scoped, tag = 'output window, operand 1, single buffered']
    #allocation13 [shape = 's32[1]{0}', space=sflag, size = 0x4, scoped, tag = 'scoped memory for tpu_custom_call.1']
    %13 = vsyncpa [#allocation3], 0
    %14 = vsyncpa [#allocation6], 0
    %15 = vsyncpa [#allocation9], 0
    %16 = vsyncpa [#allocation4], 0
    %17 = vsyncpa [#allocation13], 0
    // Predicated region
    $region2: #{tpu_custom_call.1} parent=1 // pred_check
      _
    $region3: #{tpu_custom_call.1} parent=1 // pred_check_branch
      %19 = sbr.rel (0) target = $region5
    $region4: #{tpu_custom_call.1} parent=1 // pred_region
      %21 = vsyncadd [#allocation3], 0
      %s22 = sshll.u32 %s0, 4
      %s23 = int_to_ptr.hbm [resolvable:$true] %s22
      %s24 = sshll.u32 [#allocation2], 4
      %s25 = int_to_ptr.vmem [resolvable:$true] %s24
      %30 = dma.hbm_to_vmem [thread:$0]  %s23, 1024, %s25, [#allocation3], 128, 128, 8
    $region5: #{tpu_custom_call.1} parent=1 // pred_fallthru
      _
    // Predicated region
    $region6: #{tpu_custom_call.1} parent=1 // pred_check
      _
    $region7: #{tpu_custom_call.1} parent=1 // pred_check_branch
      %32 = sbr.rel (0) target = $region9
    $region8: #{tpu_custom_call.1} parent=1 // pred_region
      %34 = vsyncadd [#allocation6], 0
      %s36 = sshll.u32 %s1, 4
      %s37 = int_to_ptr.hbm [resolvable:$true] %s36
      %s38 = sshll.u32 [#allocation5], 4
      %s39 = int_to_ptr.vmem [resolvable:$true] %s38
      %41 = dma.hbm_to_vmem [thread:$0]  %s37, 128, %s39, [#allocation6]
    $region9: #{tpu_custom_call.1} parent=1 // pred_fallthru
      _
    // Predicated region
    $region10: #{tpu_custom_call.1} parent=1 // pred_check
      _
    $region11: #{tpu_custom_call.1} parent=1 // pred_check_branch
      %43 = sbr.rel (0) target = $region13
    $region12: #{tpu_custom_call.1} parent=1 // pred_region
      %45 = vsyncadd [#allocation6], 0
      %s47 = sshll.u32 %s2, 4
      %s48 = int_to_ptr.hbm [resolvable:$true] %s47
      %s49 = sshll.u32 [#allocation7], 4
      %s50 = int_to_ptr.vmem [resolvable:$true] %s49
      %52 = dma.hbm_to_vmem [thread:$0]  %s48, 128, %s50, [#allocation6]
    $region13: #{tpu_custom_call.1} parent=1 // pred_fallthru
      _
    // Predicated region
    $region14: #{tpu_custom_call.1} parent=1 // pred_check
      _
    $region15: #{tpu_custom_call.1} parent=1 // pred_check_branch
      %54 = sbr.rel (0) target = $region17
    $region16: #{tpu_custom_call.1} parent=1 // pred_region
      %56 = vsyncadd [#allocation9], 0
      %s57 = sshll.u32 %s3, 4
      %s58 = int_to_ptr.hbm [resolvable:$true] %s57
      %s59 = sshll.u32 [#allocation8], 4
      %s60 = int_to_ptr.vmem [resolvable:$true] %s59
      %65 = dma.hbm_to_vmem [thread:$0]  %s58, 2048, %s60, [#allocation9], 128, 128, 8
    $region17: #{tpu_custom_call.1} parent=1 // pred_fallthru
      _
    // Predicated region
    $region18: #{tpu_custom_call.1} parent=1 // pred_check
      _
    $region19: #{tpu_custom_call.1} parent=1 // pred_check_branch
      %67 = sbr.rel (0) target = $region21
    $region20: #{tpu_custom_call.1} parent=1 // pred_region
      %69 = vsyncadd [#allocation9], 0
      %s70 = sshll.u32 %s4, 4
      %s71 = int_to_ptr.hbm [resolvable:$true] %s70
      %s72 = sshll.u32 [#allocation10], 4
      %s73 = int_to_ptr.vmem [resolvable:$true] %s72
      %78 = dma.hbm_to_vmem [thread:$0]  %s71, 4096, %s73, [#allocation9], 128, 128, 8
    $region21: #{tpu_custom_call.1} parent=1 // pred_fallthru
      _
    // Predicated region
    $region22: #{tpu_custom_call.1} parent=1 // pred_check
      _
    $region23: #{tpu_custom_call.1} parent=1 // pred_check_branch
      %80 = sbr.rel (0) target = $region25
    $region24: #{tpu_custom_call.1} parent=1 // pred_region
      _
    $region25: #{tpu_custom_call.1} parent=1 // pred_fallthru
      _
    // Predicated region
    $region26: #{tpu_custom_call.1} parent=1 // pred_check
      _
    $region27: #{tpu_custom_call.1} parent=1 // pred_check_branch
      %82 = sbr.rel (0) target = $region29
    $region28: #{tpu_custom_call.1} parent=1 // pred_region
      %84 = dma.done [#allocation3], 1024
    $region29: #{tpu_custom_call.1} parent=1 // pred_fallthru
      _
    // Predicated region
    $region30: #{tpu_custom_call.1} parent=1 // pred_check
      _
    $region31: #{tpu_custom_call.1} parent=1 // pred_check_branch
      %86 = sbr.rel (0) target = $region33
    $region32: #{tpu_custom_call.1} parent=1 // pred_region
      %88 = dma.done [#allocation6], 128
    $region33: #{tpu_custom_call.1} parent=1 // pred_fallthru
      _
    // Predicated region
    $region34: #{tpu_custom_call.1} parent=1 // pred_check
      _
    $region35: #{tpu_custom_call.1} parent=1 // pred_check_branch
      %90 = sbr.rel (0) target = $region37
    $region36: #{tpu_custom_call.1} parent=1 // pred_region
      %92 = dma.done [#allocation6], 128
    $region37: #{tpu_custom_call.1} parent=1 // pred_fallthru
      _
    // Predicated region
    $region38: #{tpu_custom_call.1} parent=1 // pred_check
      _
    $region39: #{tpu_custom_call.1} parent=1 // pred_check_branch
      %94 = sbr.rel (0) target = $region41
    $region40: #{tpu_custom_call.1} parent=1 // pred_region
      %96 = dma.done [#allocation9], 2048
    $region41: #{tpu_custom_call.1} parent=1 // pred_fallthru
      _
    // Predicated region
    $region42: #{tpu_custom_call.1} parent=1 // pred_check
      _
    $region43: #{tpu_custom_call.1} parent=1 // pred_check_branch
      %98 = sbr.rel (0) target = $region45
    $region44: #{tpu_custom_call.1} parent=1 // pred_region
      %100 = dma.done [#allocation9], 4096
    $region45: #{tpu_custom_call.1} parent=1 // pred_fallthru
      _
    %v101 = vld [vmem:[#allocation8] sm:$0xff]
    %v102 = vld [vmem:[#allocation8 + $0x8] sm:$0xff]
    %v103 = vld [vmem:[#allocation8 + $0x10] sm:$0xff]
    %v104 = vld [vmem:[#allocation8 + $0x18] sm:$0xff]
    %v105 = vld [vmem:[#allocation8 + $0x20] sm:$0xff]
    %v106 = vld [vmem:[#allocation8 + $0x28] sm:$0xff]
    %v107 = vld [vmem:[#allocation8 + $0x30] sm:$0xff]
    %v108 = vld [vmem:[#allocation8 + $0x38] sm:$0xff]
    %v109 = vld [vmem:[#allocation8 + $0x40] sm:$0xff]
    %v110 = vld [vmem:[#allocation8 + $0x48] sm:$0xff]
    %v111 = vld [vmem:[#allocation8 + $0x50] sm:$0xff]
    %v112 = vld [vmem:[#allocation8 + $0x58] sm:$0xff]
    %v113 = vld [vmem:[#allocation8 + $0x60] sm:$0xff]
    %v114 = vld [vmem:[#allocation8 + $0x68] sm:$0xff]
    %v115 = vld [vmem:[#allocation8 + $0x70] sm:$0xff]
    %v116 = vld [vmem:[#allocation8 + $0x78] sm:$0xff]
    %v117 = vld [vmem:[#allocation10] sm:$0xff]
    %v118 = vld [vmem:[#allocation10 + $0x8] sm:$0xff]
    %v119 = vld [vmem:[#allocation10 + $0x10] sm:$0xff]
    %v120 = vld [vmem:[#allocation10 + $0x18] sm:$0xff]
    %v121 = vld [vmem:[#allocation10 + $0x20] sm:$0xff]
    %v122 = vld [vmem:[#allocation10 + $0x28] sm:$0xff]
    %v123 = vld [vmem:[#allocation10 + $0x30] sm:$0xff]
    %v124 = vld [vmem:[#allocation10 + $0x38] sm:$0xff]
    %v125 = vld [vmem:[#allocation10 + $0x40] sm:$0xff]
    %v126 = vld [vmem:[#allocation10 + $0x48] sm:$0xff]
    %v127 = vld [vmem:[#allocation10 + $0x50] sm:$0xff]
    %v128 = vld [vmem:[#allocation10 + $0x58] sm:$0xff]
    %v129 = vld [vmem:[#allocation10 + $0x60] sm:$0xff]
    %v130 = vld [vmem:[#allocation10 + $0x68] sm:$0xff]
    %v131 = vld [vmem:[#allocation10 + $0x70] sm:$0xff]
    %v132 = vld [vmem:[#allocation10 + $0x78] sm:$0xff]
    %v133 = vld [vmem:[#allocation10 + $0x80] sm:$0xff]
    %v134 = vld [vmem:[#allocation10 + $0x88] sm:$0xff]
    %v135 = vld [vmem:[#allocation10 + $0x90] sm:$0xff]
    %v136 = vld [vmem:[#allocation10 + $0x98] sm:$0xff]
    %v137 = vld [vmem:[#allocation10 + $0xa0] sm:$0xff]
    %v138 = vld [vmem:[#allocation10 + $0xa8] sm:$0xff]
    %v139 = vld [vmem:[#allocation10 + $0xb0] sm:$0xff]
    %v140 = vld [vmem:[#allocation10 + $0xb8] sm:$0xff]
    %v141 = vld [vmem:[#allocation10 + $0xc0] sm:$0xff]
    %v142 = vld [vmem:[#allocation10 + $0xc8] sm:$0xff]
    %v143 = vld [vmem:[#allocation10 + $0xd0] sm:$0xff]
    %v144 = vld [vmem:[#allocation10 + $0xd8] sm:$0xff]
    %v145 = vld [vmem:[#allocation10 + $0xe0] sm:$0xff]
    %v146 = vld [vmem:[#allocation10 + $0xe8] sm:$0xff]
    %v147 = vld [vmem:[#allocation10 + $0xf0] sm:$0xff]
    %v148 = vld [vmem:[#allocation10 + $0xf8] sm:$0xff]
    %v149 = vld [vmem:[%s5] sm:$0x1]
    %v150 = vld [vmem:[#allocation5] sm:$0xff]
    %v151 = vld [vmem:[#allocation7] sm:$0xff]
    %v152 = vld [vmem:[#allocation2] sm:$0xff]
    %153 = vmatpush.msra.mxu0 %v116
    %154 = vmatpush.msra.mxu0 %v115
    %155 = vmatpush.msra.mxu0 %v114
    %156 = vmatpush.msra.mxu0 %v113
    %157 = vmatpush.msra.mxu0 %v112
    %158 = vmatpush.msra.mxu0 %v111
    %159 = vmatpush.msra.mxu0 %v110
    %160 = vmatpush.msra.mxu0 %v109
    %161 = vmatpush.msra.mxu0 %v108
    %162 = vmatpush.msra.mxu0 %v107
    %163 = vmatpush.msra.mxu0 %v106
    %164 = vmatpush.msra.mxu0 %v105
    %165 = vmatpush.msra.mxu0 %v104
    %166 = vmatpush.msra.mxu0 %v103
    %167 = vmatpush.msra.mxu0 %v102
    %168 = vmatpush.msra.mxu0 %v101
    %169 = vmatmul.f32.gmra.mxu0 %v150
    %v170 = vpop.f32.mrf.mxu0
    %v171 = vadd.f32 0.0, %v170
    %172 = vdwg.mxu0
    %v173 = vadd.f32 %v152, %v171
    %v174 = vtanh.pop %v173
    %v176 = vperm.slane %v149, 0
    %178 = vmatpush.msra.mxu0 %v132
    %179 = vmatpush.msra.mxu0 %v131
    %180 = vmatpush.msra.mxu0 %v130
    %181 = vmatpush.msra.mxu0 %v129
    %182 = vmatpush.msra.mxu0 %v128
    %183 = vmatpush.msra.mxu0 %v127
    %184 = vmatpush.msra.mxu0 %v126
    %185 = vmatpush.msra.mxu0 %v125
    %186 = vmatpush.msra.mxu0 %v124
    %187 = vmatpush.msra.mxu0 %v123
    %188 = vmatpush.msra.mxu0 %v122
    %189 = vmatpush.msra.mxu0 %v121
    %190 = vmatpush.msra.mxu0 %v120
    %191 = vmatpush.msra.mxu0 %v119
    %192 = vmatpush.msra.mxu0 %v118
    %193 = vmatpush.msra.mxu0 %v117
    %194 = vmatmul.f32.gmra.mxu0 %v174
    %v195 = vpop.f32.mrf.mxu0
    %v196 = vadd.f32 %v176, %v195
    %197 = vdwg.mxu0
    %198 = vmatpush.msra.mxu0 %v148
    %199 = vmatpush.msra.mxu0 %v147
    %200 = vmatpush.msra.mxu0 %v146
    %201 = vmatpush.msra.mxu0 %v145
    %202 = vmatpush.msra.mxu0 %v144
    %203 = vmatpush.msra.mxu0 %v143
    %204 = vmatpush.msra.mxu0 %v142
    %205 = vmatpush.msra.mxu0 %v141
    %206 = vmatpush.msra.mxu0 %v140
    %207 = vmatpush.msra.mxu0 %v139
    %208 = vmatpush.msra.mxu0 %v138
    %209 = vmatpush.msra.mxu0 %v137
    %210 = vmatpush.msra.mxu0 %v136
    %211 = vmatpush.msra.mxu0 %v135
    %212 = vmatpush.msra.mxu0 %v134
    %213 = vmatpush.msra.mxu0 %v133
    %214 = vmatmul.f32.gmra.mxu0 %v151
    %v215 = vpop.f32.mrf.mxu0
    %v216 = vadd.f32 %v196, %v215
    %217 = vdwg.mxu0
    %v218 = vtanh.pop %v216
    %219 = vst [vmem:[#allocation11] sm:$0xff] %v218
    %s220 = scalar_lea.vmem [#allocation2], 8
    %v221 = vld [vmem:[%s220] sm:$0xff]
    %222 = vmatpush.msra.mxu0 %v116
    %223 = vmatpush.msra.mxu0 %v115
    %224 = vmatpush.msra.mxu0 %v114
    %225 = vmatpush.msra.mxu0 %v113
    %226 = vmatpush.msra.mxu0 %v112
    %227 = vmatpush.msra.mxu0 %v111
    %228 = vmatpush.msra.mxu0 %v110
    %229 = vmatpush.msra.mxu0 %v109
    %230 = vmatpush.msra.mxu0 %v108
    %231 = vmatpush.msra.mxu0 %v107
    %232 = vmatpush.msra.mxu0 %v106
    %233 = vmatpush.msra.mxu0 %v105
    %234 = vmatpush.msra.mxu0 %v104
    %235 = vmatpush.msra.mxu0 %v103
    %236 = vmatpush.msra.mxu0 %v102
    %237 = vmatpush.msra.mxu0 %v101
    %238 = vmatmul.f32.gmra.mxu0 %v174
    %v239 = vpop.f32.mrf.mxu0
    %v240 = vadd.f32 0.0, %v239
    %241 = vdwg.mxu0
    %v242 = vadd.f32 %v221, %v240
    %v243 = vtanh.pop %v242
    %244 = vmatpush.msra.mxu0 %v132
    %245 = vmatpush.msra.mxu0 %v131
    %246 = vmatpush.msra.mxu0 %v130
    %247 = vmatpush.msra.mxu0 %v129
    %248 = vmatpush.msra.mxu0 %v128
    %249 = vmatpush.msra.mxu0 %v127
    %250 = vmatpush.msra.mxu0 %v126
    %251 = vmatpush.msra.mxu0 %v125
    %252 = vmatpush.msra.mxu0 %v124
    %253 = vmatpush.msra.mxu0 %v123
    %254 = vmatpush.msra.mxu0 %v122
    %255 = vmatpush.msra.mxu0 %v121
    %256 = vmatpush.msra.mxu0 %v120
    %257 = vmatpush.msra.mxu0 %v119
    %258 = vmatpush.msra.mxu0 %v118
    %259 = vmatpush.msra.mxu0 %v117
    %260 = vmatmul.f32.gmra.mxu0 %v243
    %v261 = vpop.f32.mrf.mxu0
    %v262 = vadd.f32 %v176, %v261
    %263 = vdwg.mxu0
    %264 = vmatpush.msra.mxu0 %v148
    %265 = vmatpush.msra.mxu0 %v147
    %266 = vmatpush.msra.mxu0 %v146
    %267 = vmatpush.msra.mxu0 %v145
    %268 = vmatpush.msra.mxu0 %v144
    %269 = vmatpush.msra.mxu0 %v143
    %270 = vmatpush.msra.mxu0 %v142
    %271 = vmatpush.msra.mxu0 %v141
    %272 = vmatpush.msra.mxu0 %v140
    %273 = vmatpush.msra.mxu0 %v139
    %274 = vmatpush.msra.mxu0 %v138
    %275 = vmatpush.msra.mxu0 %v137
    %276 = vmatpush.msra.mxu0 %v136
    %277 = vmatpush.msra.mxu0 %v135
    %278 = vmatpush.msra.mxu0 %v134
    %279 = vmatpush.msra.mxu0 %v133
    %280 = vmatmul.f32.gmra.mxu0 %v218
    %v281 = vpop.f32.mrf.mxu0
    %v282 = vadd.f32 %v262, %v281
    %283 = vdwg.mxu0
    %v284 = vtanh.pop %v282
    %s285 = scalar_lea.vmem [#allocation11], 8
    %286 = vst [vmem:[%s285] sm:$0xff] %v284
    %s287 = scalar_lea.vmem [#allocation2], 16
    %v288 = vld [vmem:[%s287] sm:$0xff]
    %289 = vmatpush.msra.mxu0 %v116
    %290 = vmatpush.msra.mxu0 %v115
    %291 = vmatpush.msra.mxu0 %v114
    %292 = vmatpush.msra.mxu0 %v113
    %293 = vmatpush.msra.mxu0 %v112
    %294 = vmatpush.msra.mxu0 %v111
    %295 = vmatpush.msra.mxu0 %v110
    %296 = vmatpush.msra.mxu0 %v109
    %297 = vmatpush.msra.mxu0 %v108
    %298 = vmatpush.msra.mxu0 %v107
    %299 = vmatpush.msra.mxu0 %v106
    %300 = vmatpush.msra.mxu0 %v105
    %301 = vmatpush.msra.mxu0 %v104
    %302 = vmatpush.msra.mxu0 %v103
    %303 = vmatpush.msra.mxu0 %v102
    %304 = vmatpush.msra.mxu0 %v101
    %305 = vmatmul.f32.gmra.mxu0 %v243
    %v306 = vpop.f32.mrf.mxu0
    %v307 = vadd.f32 0.0, %v306
    %308 = vdwg.mxu0
    %v309 = vadd.f32 %v288, %v307
    %v310 = vtanh.pop %v309
    %311 = vmatpush.msra.mxu0 %v132
    %312 = vmatpush.msra.mxu0 %v131
    %313 = vmatpush.msra.mxu0 %v130
    %314 = vmatpush.msra.mxu0 %v129
    %315 = vmatpush.msra.mxu0 %v128
    %316 = vmatpush.msra.mxu0 %v127
    %317 = vmatpush.msra.mxu0 %v126
    %318 = vmatpush.msra.mxu0 %v125
    %319 = vmatpush.msra.mxu0 %v124
    %320 = vmatpush.msra.mxu0 %v123
    %321 = vmatpush.msra.mxu0 %v122
    %322 = vmatpush.msra.mxu0 %v121
    %323 = vmatpush.msra.mxu0 %v120
    %324 = vmatpush.msra.mxu0 %v119
    %325 = vmatpush.msra.mxu0 %v118
    %326 = vmatpush.msra.mxu0 %v117
    %327 = vmatmul.f32.gmra.mxu0 %v310
    %v328 = vpop.f32.mrf.mxu0
    %v329 = vadd.f32 %v176, %v328
    %330 = vdwg.mxu0
    %331 = vmatpush.msra.mxu0 %v148
    %332 = vmatpush.msra.mxu0 %v147
    %333 = vmatpush.msra.mxu0 %v146
    %334 = vmatpush.msra.mxu0 %v145
    %335 = vmatpush.msra.mxu0 %v144
    %336 = vmatpush.msra.mxu0 %v143
    %337 = vmatpush.msra.mxu0 %v142
    %338 = vmatpush.msra.mxu0 %v141
    %339 = vmatpush.msra.mxu0 %v140
    %340 = vmatpush.msra.mxu0 %v139
    %341 = vmatpush.msra.mxu0 %v138
    %342 = vmatpush.msra.mxu0 %v137
    %343 = vmatpush.msra.mxu0 %v136
    %344 = vmatpush.msra.mxu0 %v135
    %345 = vmatpush.msra.mxu0 %v134
    %346 = vmatpush.msra.mxu0 %v133
    %347 = vmatmul.f32.gmra.mxu0 %v284
    %v348 = vpop.f32.mrf.mxu0
    %v349 = vadd.f32 %v329, %v348
    %350 = vdwg.mxu0
    %v351 = vtanh.pop %v349
    %s352 = scalar_lea.vmem [#allocation11], 16
    %353 = vst [vmem:[%s352] sm:$0xff] %v351
    %s354 = scalar_lea.vmem [#allocation2], 24
    %v355 = vld [vmem:[%s354] sm:$0xff]
    %356 = vmatpush.msra.mxu0 %v116
    %357 = vmatpush.msra.mxu0 %v115
    %358 = vmatpush.msra.mxu0 %v114
    %359 = vmatpush.msra.mxu0 %v113
    %360 = vmatpush.msra.mxu0 %v112
    %361 = vmatpush.msra.mxu0 %v111
    %362 = vmatpush.msra.mxu0 %v110
    %363 = vmatpush.msra.mxu0 %v109
    %364 = vmatpush.msra.mxu0 %v108
    %365 = vmatpush.msra.mxu0 %v107
    %366 = vmatpush.msra.mxu0 %v106
    %367 = vmatpush.msra.mxu0 %v105
    %368 = vmatpush.msra.mxu0 %v104
    %369 = vmatpush.msra.mxu0 %v103
    %370 = vmatpush.msra.mxu0 %v102
    %371 = vmatpush.msra.mxu0 %v101
    %372 = vmatmul.f32.gmra.mxu0 %v310
    %v373 = vpop.f32.mrf.mxu0
    %v374 = vadd.f32 0.0, %v373
    %375 = vdwg.mxu0
    %v376 = vadd.f32 %v355, %v374
    %v377 = vtanh.pop %v376
    %378 = vmatpush.msra.mxu0 %v132
    %379 = vmatpush.msra.mxu0 %v131
    %380 = vmatpush.msra.mxu0 %v130
    %381 = vmatpush.msra.mxu0 %v129
    %382 = vmatpush.msra.mxu0 %v128
    %383 = vmatpush.msra.mxu0 %v127
    %384 = vmatpush.msra.mxu0 %v126
    %385 = vmatpush.msra.mxu0 %v125
    %386 = vmatpush.msra.mxu0 %v124
    %387 = vmatpush.msra.mxu0 %v123
    %388 = vmatpush.msra.mxu0 %v122
    %389 = vmatpush.msra.mxu0 %v121
    %390 = vmatpush.msra.mxu0 %v120
    %391 = vmatpush.msra.mxu0 %v119
    %392 = vmatpush.msra.mxu0 %v118
    %393 = vmatpush.msra.mxu0 %v117
    %394 = vmatmul.f32.gmra.mxu0 %v377
    %v395 = vpop.f32.mrf.mxu0
    %v396 = vadd.f32 %v176, %v395
    %397 = vdwg.mxu0
    %398 = vmatpush.msra.mxu0 %v148
    %399 = vmatpush.msra.mxu0 %v147
    %400 = vmatpush.msra.mxu0 %v146
    %401 = vmatpush.msra.mxu0 %v145
    %402 = vmatpush.msra.mxu0 %v144
    %403 = vmatpush.msra.mxu0 %v143
    %404 = vmatpush.msra.mxu0 %v142
    %405 = vmatpush.msra.mxu0 %v141
    %406 = vmatpush.msra.mxu0 %v140
    %407 = vmatpush.msra.mxu0 %v139
    %408 = vmatpush.msra.mxu0 %v138
    %409 = vmatpush.msra.mxu0 %v137
    %410 = vmatpush.msra.mxu0 %v136
    %411 = vmatpush.msra.mxu0 %v135
    %412 = vmatpush.msra.mxu0 %v134
    %413 = vmatpush.msra.mxu0 %v133
    %414 = vmatmul.f32.gmra.mxu0 %v351
    %v415 = vpop.f32.mrf.mxu0
    %v416 = vadd.f32 %v396, %v415
    %417 = vdwg.mxu0
    %v418 = vtanh.pop %v416
    %s419 = scalar_lea.vmem [#allocation11], 24
    %420 = vst [vmem:[%s419] sm:$0xff] %v418
    %s421 = scalar_lea.vmem [#allocation2], 32
    %v422 = vld [vmem:[%s421] sm:$0xff]
    %423 = vmatpush.msra.mxu0 %v116
    %424 = vmatpush.msra.mxu0 %v115
    %425 = vmatpush.msra.mxu0 %v114
    %426 = vmatpush.msra.mxu0 %v113
    %427 = vmatpush.msra.mxu0 %v112
    %428 = vmatpush.msra.mxu0 %v111
    %429 = vmatpush.msra.mxu0 %v110
    %430 = vmatpush.msra.mxu0 %v109
    %431 = vmatpush.msra.mxu0 %v108
    %432 = vmatpush.msra.mxu0 %v107
    %433 = vmatpush.msra.mxu0 %v106
    %434 = vmatpush.msra.mxu0 %v105
    %435 = vmatpush.msra.mxu0 %v104
    %436 = vmatpush.msra.mxu0 %v103
    %437 = vmatpush.msra.mxu0 %v102
    %438 = vmatpush.msra.mxu0 %v101
    %439 = vmatmul.f32.gmra.mxu0 %v377
    %v440 = vpop.f32.mrf.mxu0
    %v441 = vadd.f32 0.0, %v440
    %442 = vdwg.mxu0
    %v443 = vadd.f32 %v422, %v441
    %v444 = vtanh.pop %v443
    %445 = vmatpush.msra.mxu0 %v132
    %446 = vmatpush.msra.mxu0 %v131
    %447 = vmatpush.msra.mxu0 %v130
    %448 = vmatpush.msra.mxu0 %v129
    %449 = vmatpush.msra.mxu0 %v128
    %450 = vmatpush.msra.mxu0 %v127
    %451 = vmatpush.msra.mxu0 %v126
    %452 = vmatpush.msra.mxu0 %v125
    %453 = vmatpush.msra.mxu0 %v124
    %454 = vmatpush.msra.mxu0 %v123
    %455 = vmatpush.msra.mxu0 %v122
    %456 = vmatpush.msra.mxu0 %v121
    %457 = vmatpush.msra.mxu0 %v120
    %458 = vmatpush.msra.mxu0 %v119
    %459 = vmatpush.msra.mxu0 %v118
    %460 = vmatpush.msra.mxu0 %v117
    %461 = vmatmul.f32.gmra.mxu0 %v444
    %v462 = vpop.f32.mrf.mxu0
    %v463 = vadd.f32 %v176, %v462
    %464 = vdwg.mxu0
    %465 = vmatpush.msra.mxu0 %v148
    %466 = vmatpush.msra.mxu0 %v147
    %467 = vmatpush.msra.mxu0 %v146
    %468 = vmatpush.msra.mxu0 %v145
    %469 = vmatpush.msra.mxu0 %v144
    %470 = vmatpush.msra.mxu0 %v143
    %471 = vmatpush.msra.mxu0 %v142
    %472 = vmatpush.msra.mxu0 %v141
    %473 = vmatpush.msra.mxu0 %v140
    %474 = vmatpush.msra.mxu0 %v139
    %475 = vmatpush.msra.mxu0 %v138
    %476 = vmatpush.msra.mxu0 %v137
    %477 = vmatpush.msra.mxu0 %v136
    %478 = vmatpush.msra.mxu0 %v135
    %479 = vmatpush.msra.mxu0 %v134
    %480 = vmatpush.msra.mxu0 %v133
    %481 = vmatmul.f32.gmra.mxu0 %v418
    %v482 = vpop.f32.mrf.mxu0
    %v483 = vadd.f32 %v463, %v482
    %484 = vdwg.mxu0
    %v485 = vtanh.pop %v483
    %s486 = scalar_lea.vmem [#allocation11], 32
    %487 = vst [vmem:[%s486] sm:$0xff] %v485
    %s488 = scalar_lea.vmem [#allocation2], 40
    %v489 = vld [vmem:[%s488] sm:$0xff]
    %490 = vmatpush.msra.mxu0 %v116
    %491 = vmatpush.msra.mxu0 %v115
    %492 = vmatpush.msra.mxu0 %v114
    %493 = vmatpush.msra.mxu0 %v113
    %494 = vmatpush.msra.mxu0 %v112
    %495 = vmatpush.msra.mxu0 %v111
    %496 = vmatpush.msra.mxu0 %v110
    %497 = vmatpush.msra.mxu0 %v109
    %498 = vmatpush.msra.mxu0 %v108
    %499 = vmatpush.msra.mxu0 %v107
    %500 = vmatpush.msra.mxu0 %v106
    %501 = vmatpush.msra.mxu0 %v105
    %502 = vmatpush.msra.mxu0 %v104
    %503 = vmatpush.msra.mxu0 %v103
    %504 = vmatpush.msra.mxu0 %v102
    %505 = vmatpush.msra.mxu0 %v101
    %506 = vmatmul.f32.gmra.mxu0 %v444
    %v507 = vpop.f32.mrf.mxu0
    %v508 = vadd.f32 0.0, %v507
    %509 = vdwg.mxu0
    %v510 = vadd.f32 %v489, %v508
    %v511 = vtanh.pop %v510
    %512 = vmatpush.msra.mxu0 %v132
    %513 = vmatpush.msra.mxu0 %v131
    %514 = vmatpush.msra.mxu0 %v130
    %515 = vmatpush.msra.mxu0 %v129
    %516 = vmatpush.msra.mxu0 %v128
    %517 = vmatpush.msra.mxu0 %v127
    %518 = vmatpush.msra.mxu0 %v126
    %519 = vmatpush.msra.mxu0 %v125
    %520 = vmatpush.msra.mxu0 %v124
    %521 = vmatpush.msra.mxu0 %v123
    %522 = vmatpush.msra.mxu0 %v122
    %523 = vmatpush.msra.mxu0 %v121
    %524 = vmatpush.msra.mxu0 %v120
    %525 = vmatpush.msra.mxu0 %v119
    %526 = vmatpush.msra.mxu0 %v118
    %527 = vmatpush.msra.mxu0 %v117
    %528 = vmatmul.f32.gmra.mxu0 %v511
    %v529 = vpop.f32.mrf.mxu0
    %v530 = vadd.f32 %v176, %v529
    %531 = vdwg.mxu0
    %532 = vmatpush.msra.mxu0 %v148
    %533 = vmatpush.msra.mxu0 %v147
    %534 = vmatpush.msra.mxu0 %v146
    %535 = vmatpush.msra.mxu0 %v145
    %536 = vmatpush.msra.mxu0 %v144
    %537 = vmatpush.msra.mxu0 %v143
    %538 = vmatpush.msra.mxu0 %v142
    %539 = vmatpush.msra.mxu0 %v141
    %540 = vmatpush.msra.mxu0 %v140
    %541 = vmatpush.msra.mxu0 %v139
    %542 = vmatpush.msra.mxu0 %v138
    %543 = vmatpush.msra.mxu0 %v137
    %544 = vmatpush.msra.mxu0 %v136
    %545 = vmatpush.msra.mxu0 %v135
    %546 = vmatpush.msra.mxu0 %v134
    %547 = vmatpush.msra.mxu0 %v133
    %548 = vmatmul.f32.gmra.mxu0 %v485
    %v549 = vpop.f32.mrf.mxu0
    %v550 = vadd.f32 %v530, %v549
    %551 = vdwg.mxu0
    %v552 = vtanh.pop %v550
    %s553 = scalar_lea.vmem [#allocation11], 40
    %554 = vst [vmem:[%s553] sm:$0xff] %v552
    %s555 = scalar_lea.vmem [#allocation2], 48
    %v556 = vld [vmem:[%s555] sm:$0xff]
    %557 = vmatpush.msra.mxu0 %v116
    %558 = vmatpush.msra.mxu0 %v115
    %559 = vmatpush.msra.mxu0 %v114
    %560 = vmatpush.msra.mxu0 %v113
    %561 = vmatpush.msra.mxu0 %v112
    %562 = vmatpush.msra.mxu0 %v111
    %563 = vmatpush.msra.mxu0 %v110
    %564 = vmatpush.msra.mxu0 %v109
    %565 = vmatpush.msra.mxu0 %v108
    %566 = vmatpush.msra.mxu0 %v107
    %567 = vmatpush.msra.mxu0 %v106
    %568 = vmatpush.msra.mxu0 %v105
    %569 = vmatpush.msra.mxu0 %v104
    %570 = vmatpush.msra.mxu0 %v103
    %571 = vmatpush.msra.mxu0 %v102
    %572 = vmatpush.msra.mxu0 %v101
    %573 = vmatmul.f32.gmra.mxu0 %v511
    %v574 = vpop.f32.mrf.mxu0
    %v575 = vadd.f32 0.0, %v574
    %576 = vdwg.mxu0
    %v577 = vadd.f32 %v556, %v575
    %v578 = vtanh.pop %v577
    %579 = vmatpush.msra.mxu0 %v132
    %580 = vmatpush.msra.mxu0 %v131
    %581 = vmatpush.msra.mxu0 %v130
    %582 = vmatpush.msra.mxu0 %v129
    %583 = vmatpush.msra.mxu0 %v128
    %584 = vmatpush.msra.mxu0 %v127
    %585 = vmatpush.msra.mxu0 %v126
    %586 = vmatpush.msra.mxu0 %v125
    %587 = vmatpush.msra.mxu0 %v124
    %588 = vmatpush.msra.mxu0 %v123
    %589 = vmatpush.msra.mxu0 %v122
    %590 = vmatpush.msra.mxu0 %v121
    %591 = vmatpush.msra.mxu0 %v120
    %592 = vmatpush.msra.mxu0 %v119
    %593 = vmatpush.msra.mxu0 %v118
    %594 = vmatpush.msra.mxu0 %v117
    %595 = vmatmul.f32.gmra.mxu0 %v578
    %v596 = vpop.f32.mrf.mxu0
    %v597 = vadd.f32 %v176, %v596
    %598 = vdwg.mxu0
    %599 = vmatpush.msra.mxu0 %v148
    %600 = vmatpush.msra.mxu0 %v147
    %601 = vmatpush.msra.mxu0 %v146
    %602 = vmatpush.msra.mxu0 %v145
    %603 = vmatpush.msra.mxu0 %v144
    %604 = vmatpush.msra.mxu0 %v143
    %605 = vmatpush.msra.mxu0 %v142
    %606 = vmatpush.msra.mxu0 %v141
    %607 = vmatpush.msra.mxu0 %v140
    %608 = vmatpush.msra.mxu0 %v139
    %609 = vmatpush.msra.mxu0 %v138
    %610 = vmatpush.msra.mxu0 %v137
    %611 = vmatpush.msra.mxu0 %v136
    %612 = vmatpush.msra.mxu0 %v135
    %613 = vmatpush.msra.mxu0 %v134
    %614 = vmatpush.msra.mxu0 %v133
    %615 = vmatmul.f32.gmra.mxu0 %v552
    %v616 = vpop.f32.mrf.mxu0
    %v617 = vadd.f32 %v597, %v616
    %618 = vdwg.mxu0
    %v619 = vtanh.pop %v617
    %s620 = scalar_lea.vmem [#allocation11], 48
    %621 = vst [vmem:[%s620] sm:$0xff] %v619
    %s622 = scalar_lea.vmem [#allocation2], 56
    %v623 = vld [vmem:[%s622] sm:$0xff]
    %624 = vmatpush.msra.mxu0 %v116
    %625 = vmatpush.msra.mxu0 %v115
    %626 = vmatpush.msra.mxu0 %v114
    %627 = vmatpush.msra.mxu0 %v113
    %628 = vmatpush.msra.mxu0 %v112
    %629 = vmatpush.msra.mxu0 %v111
    %630 = vmatpush.msra.mxu0 %v110
    %631 = vmatpush.msra.mxu0 %v109
    %632 = vmatpush.msra.mxu0 %v108
    %633 = vmatpush.msra.mxu0 %v107
    %634 = vmatpush.msra.mxu0 %v106
    %635 = vmatpush.msra.mxu0 %v105
    %636 = vmatpush.msra.mxu0 %v104
    %637 = vmatpush.msra.mxu0 %v103
    %638 = vmatpush.msra.mxu0 %v102
    %639 = vmatpush.msra.mxu0 %v101
    %640 = vmatmul.f32.gmra.mxu0 %v578
    %v641 = vpop.f32.mrf.mxu0
    %v642 = vadd.f32 0.0, %v641
    %643 = vdwg.mxu0
    %v644 = vadd.f32 %v623, %v642
    %v645 = vtanh.pop %v644
    %646 = vmatpush.msra.mxu0 %v132
    %647 = vmatpush.msra.mxu0 %v131
    %648 = vmatpush.msra.mxu0 %v130
    %649 = vmatpush.msra.mxu0 %v129
    %650 = vmatpush.msra.mxu0 %v128
    %651 = vmatpush.msra.mxu0 %v127
    %652 = vmatpush.msra.mxu0 %v126
    %653 = vmatpush.msra.mxu0 %v125
    %654 = vmatpush.msra.mxu0 %v124
    %655 = vmatpush.msra.mxu0 %v123
    %656 = vmatpush.msra.mxu0 %v122
    %657 = vmatpush.msra.mxu0 %v121
    %658 = vmatpush.msra.mxu0 %v120
    %659 = vmatpush.msra.mxu0 %v119
    %660 = vmatpush.msra.mxu0 %v118
    %661 = vmatpush.msra.mxu0 %v117
    %662 = vmatmul.f32.gmra.mxu0 %v645
    %v663 = vpop.f32.mrf.mxu0
    %v664 = vadd.f32 %v176, %v663
    %665 = vdwg.mxu0
    %666 = vmatpush.msra.mxu0 %v148
    %667 = vmatpush.msra.mxu0 %v147
    %668 = vmatpush.msra.mxu0 %v146
    %669 = vmatpush.msra.mxu0 %v145
    %670 = vmatpush.msra.mxu0 %v144
    %671 = vmatpush.msra.mxu0 %v143
    %672 = vmatpush.msra.mxu0 %v142
    %673 = vmatpush.msra.mxu0 %v141
    %674 = vmatpush.msra.mxu0 %v140
    %675 = vmatpush.msra.mxu0 %v139
    %676 = vmatpush.msra.mxu0 %v138
    %677 = vmatpush.msra.mxu0 %v137
    %678 = vmatpush.msra.mxu0 %v136
    %679 = vmatpush.msra.mxu0 %v135
    %680 = vmatpush.msra.mxu0 %v134
    %681 = vmatpush.msra.mxu0 %v133
    %682 = vmatmul.f32.gmra.mxu0 %v619
    %v683 = vpop.f32.mrf.mxu0
    %v684 = vadd.f32 %v664, %v683
    %685 = vdwg.mxu0
    %v686 = vtanh.pop %v684
    %s687 = scalar_lea.vmem [#allocation11], 56
    %688 = vst [vmem:[%s687] sm:$0xff] %v686
    %689 = vst [vmem:[#allocation12] sm:$0xff] %v645
    %s690 = scalar_lea.vmem [#allocation12], 8
    %691 = vst [vmem:[%s690] sm:$0xff] %v686
    // Predicated region
    $region46: #{tpu_custom_call.1} parent=1 // pred_check
      _
    $region47: #{tpu_custom_call.1} parent=1 // pred_check_branch
      %693 = sbr.rel (0) target = $region49
    $region48: #{tpu_custom_call.1} parent=1 // pred_region
      %695 = vsyncadd [#allocation4], 0
      %s696 = sshll.u32 [#allocation11], 4
      %s697 = int_to_ptr.vmem [resolvable:$true] %s696
      %s698 = sshll.u32 %s6, 4
      %s699 = int_to_ptr.hbm [resolvable:$true] %s698
      %704 = dma.vmem_to_hbm [thread:$0]  %s697, 1024, %s699, [#allocation4], 128, 128, 8
    $region49: #{tpu_custom_call.1} parent=1 // pred_fallthru
      _
    // Predicated region
    $region50: #{tpu_custom_call.1} parent=1 // pred_check
      _
    $region51: #{tpu_custom_call.1} parent=1 // pred_check_branch
      %706 = sbr.rel (0) target = $region53
    $region52: #{tpu_custom_call.1} parent=1 // pred_region
      %708 = vsyncadd [#allocation13], 0
      %s709 = sshll.u32 [#allocation12], 4
      %s710 = int_to_ptr.vmem [resolvable:$true] %s709
      %s711 = sshll.u32 %s7, 4
      %s712 = int_to_ptr.hbm [resolvable:$true] %s711
      %717 = dma.vmem_to_hbm [thread:$0]  %s710, 256, %s712, [#allocation13], 128, 128, 8
    $region53: #{tpu_custom_call.1} parent=1 // pred_fallthru
      _
    // Predicated region
    $region54: #{tpu_custom_call.1} parent=1 // pred_check
      _
    $region55: #{tpu_custom_call.1} parent=1 // pred_check_branch
      %719 = sbr.rel (0) target = $region57
    $region56: #{tpu_custom_call.1} parent=1 // pred_region
      %721 = dma.done [#allocation4], 1024
    $region57: #{tpu_custom_call.1} parent=1 // pred_fallthru
      _
    // Predicated region
    $region58: #{tpu_custom_call.1} parent=1 // pred_check
      _
    $region59: #{tpu_custom_call.1} parent=1 // pred_check_branch
      %723 = sbr.rel (0) target = $region61
    $region60: #{tpu_custom_call.1} parent=1 // pred_region
      %725 = dma.done [#allocation13], 256
    $region61: #{tpu_custom_call.1} parent=1 // pred_fallthru
      _
    %726 = vsyncpa [#allocation3], 1
    %727 = vsyncpa [#allocation6], 1
    %728 = vsyncpa [#allocation9], 1
    %729 = vsyncpa [#allocation4], 1
    %730 = vsyncpa [#allocation13], 1

</llo_original>
